<compile_context>
chip_gen: v6e
topology: v6e:2x2x1
jax: 0.10.0
libtpu: 0.0.40
codegen_flags: <defaults>
</compile_context>

<pallas_src>
import jax
import jax.numpy as jnp
import numpy as np
from jax.experimental import pallas as pl
from jax.experimental.pallas import tpu as pltpu

# bf16 operands on the MXU (f32 accumulation via preferred_element_type).
MATMUL_DTYPE = jnp.bfloat16

# K/V head blocks only change block index with the batch axis; set to
# pl.Buffered(1) on VMEM-tight chips (v7x) at large S*E to halve their VMEM.
KV_PIPELINE_MODE = None

_LN_EPS = 1e-6  # module uses eps=1e-06


def _pick_seq_tile(S):
    for t in (512, 256, 128, 64, 32, 16, 8):
        if S % t == 0:
            return t
    return S  # block == full dim is always legal


def _vmem_limit_bytes(requested):
    """Generation-aware VMEM budget (75% of physical capacity cap)."""
    try:
        cap = int(pltpu.get_tpu_info().vmem_capacity_bytes)
        if cap <= 0:
            cap = 64 * 2**20
    except Exception:
        cap = 64 * 2**20  # conservative (v7x physical VMEM)
    return int(max(16 * 2**20, min(int(requested), (cap * 3) // 4)))


def _const_spec(arr, pipeline_mode):
    """BlockSpec for a weight that is constant across the whole grid."""
    nd = arr.ndim
    idx = lambda b, t, _nd=nd: (0,) * _nd
    if pipeline_mode is None:
        return pl.BlockSpec(arr.shape, idx)
    return pl.BlockSpec(arr.shape, idx, pipeline_mode=pipeline_mode)


# ---------------------------------------------------------------------------
# Hoisted QKV projection kernel (x @ W + b), tiled over (batch, seq tiles).
# ---------------------------------------------------------------------------
def _linear_kernel(x_ref, w_ref, b_ref, o_ref):
    y = jnp.dot(x_ref[0].astype(MATMUL_DTYPE), w_ref[...],
                preferred_element_type=jnp.float32) + b_ref[...].astype(jnp.float32)
    o_ref[0] = y.astype(o_ref.dtype)


def _linear(x, w, b, out_dtype, weight_mode):
    B, S, E_in = x.shape
    E_out = w.shape[1]
    ts = _pick_seq_tile(S)
    return pl.pallas_call(
        _linear_kernel,
        out_shape=jax.ShapeDtypeStruct((B, S, E_out), out_dtype),
        grid=(B, S // ts),
        in_specs=[pl.BlockSpec((1, ts, E_in), lambda b, t: (b, t, 0)),
                  _const_spec(w, weight_mode),
                  _const_spec(b, weight_mode)],
        out_specs=pl.BlockSpec((1, ts, E_out), lambda b, t: (b, t, 0)),
        compiler_params=pltpu.CompilerParams(
            dimension_semantics=("parallel", "parallel")),
    )(x, w, b)


# ---------------------------------------------------------------------------
# Attention + residual LN + FFN + residual LN kernel (consumes projected,
# head-split Q/K/V; grid = (batch, q tiles)).
# ---------------------------------------------------------------------------
def make_encoder_block_kernel():
    def layernorm(x, g, b):
        mu = jnp.mean(x, axis=-1, keepdims=True)
        var = jnp.mean((x - mu) ** 2, axis=-1, keepdims=True)
        return (x - mu) * jax.lax.rsqrt(var + _LN_EPS) * g + b

    def mm(a_f32, w_val):
        return jnp.dot(a_f32.astype(MATMUL_DTYPE), w_val,
                       preferred_element_type=jnp.float32)

    def kernel(xq_ref, q_ref, k_ref, v_ref,
               wo_ref, bo_ref, g1_ref, be1_ref, g2_ref, be2_ref,
               w1_ref, b1_ref, w2_ref, b2_ref, o_ref):
        f32 = jnp.float32
        xq = xq_ref[0].astype(f32)              # (tq, E)      residual path
        qh = q_ref[0]                           # (H, tq, hd)  bf16, scale folded
        kh = k_ref[0]                           # (H, S,  hd)
        vh = v_ref[0]                           # (H, S,  hd)

        # Head-batched attention: one batched MXU matmul per stage.
        # TODO(synk): for S >= ~2K switch to an online-softmax (flash) K/V loop
        #             with VMEM accumulators instead of full (H, tq, S) scores.
        s = jnp.einsum("hqd,hkd->hqk", qh, kh, preferred_element_type=f32)
        m = jnp.max(s, axis=-1, keepdims=True)
        p = jnp.exp(s - m)
        inv = pl.reciprocal(jnp.sum(p, axis=-1, keepdims=True), approx=True)
        ctx = jnp.einsum("hqk,hkd->hqd", p.astype(MATMUL_DTYPE), vh,
                         preferred_element_type=f32) * inv              # (H, tq, hd)

        # Per-head output projection folded in (no concat/relayout), summed over heads.
        head_out = jnp.einsum("hqd,hde->hqe", ctx.astype(MATMUL_DTYPE), wo_ref[...],
                              preferred_element_type=f32)               # (H, tq, E)
        attn = bo_ref[...].astype(f32) + jnp.sum(head_out, axis=0)      # (tq, E)

        # dropout_1: identity in eval mode.
        out1 = layernorm(xq + attn, g1_ref[...], be1_ref[...])

        # FFN: Linear -> ReLU -> Linear (weights pre-transposed to (in, out)).
        # TODO(synk): tile the FFN over ff_dim for FF >= ~4K to bound VMEM on v7x.
        h1 = jnp.maximum(mm(out1, w1_ref[...]) + b1_ref[...].astype(f32), 0.0)
        ffn = mm(h1, w2_ref[...]) + b2_ref[...].astype(f32)
        # dropout_2: identity in eval mode.

        out2 = layernorm(out1 + ffn, g2_ref[...], be2_ref[...])
        # TODO(synk): if production E < 128, repack output lane-dense to avoid
        #             masked vst partial stores.
        o_ref[0] = out2.astype(o_ref.dtype)

    return kernel


def _encoder_block_impl(query, key, value, params, num_heads, weight_mode):
    B, S, E = query.shape
    H = num_heads
    hd = E // H
    scale = 1.0 / float(np.sqrt(hd))
    ff_dim = params["w1"].shape[0]
    tq = _pick_seq_tile(S)
    mdt, f32 = MATMUL_DTYPE, jnp.float32

    # ---- Host-side weight prep: split packed in_proj, transpose to (in, out),
    # fold 1/sqrt(hd) into the Q projection, cast matmul weights to bf16.
    w_in, b_in = params["w_in"], params["b_in"]
    w_q = (w_in[:E].T * scale).astype(mdt)
    b_q = (b_in[:, :E] * scale).astype(f32)
    w_k = w_in[E:2 * E].T.astype(mdt)
    b_k = b_in[:, E:2 * E].astype(f32)
    w_v = w_in[2 * E:].T.astype(mdt)
    b_v = b_in[:, 2 * E:].astype(f32)

    # ---- Hoisted QKV projection (runs once per token, not once per q tile).
    if key is query and value is query:
        # Self-attention: fused (E, 3E) projection -> one lane-dense MXU matmul.
        w_qkv = jnp.concatenate([w_q, w_k, w_v], axis=1)
        b_qkv = jnp.concatenate([b_q, b_k, b_v], axis=1)
        qkv = _linear(query, w_qkv, b_qkv, mdt, weight_mode)
        qp, kp, vp = qkv[..., :E], qkv[..., E:2 * E], qkv[..., 2 * E:]
    else:
        qp = _linear(query, w_q, b_q, mdt, weight_mode)
        kp = _linear(key,   w_k, b_k, mdt, weight_mode)
        vp = _linear(value, w_v, b_v, mdt, weight_mode)

    # Head split outside the kernel (cheap XLA relayout in HBM): (B, H, S, hd).
    def split_heads(x):
        return x.reshape(B, S, H, hd).transpose(0, 2, 1, 3)

    q_heads, k_heads, v_heads = split_heads(qp), split_heads(kp), split_heads(vp)

    wo_heads = params["w_out"].T.reshape(H, hd, E).astype(mdt)   # per-head out-proj
    consts = [wo_heads, params["b_out"].astype(f32),
              params["g1"].astype(f32), params["be1"].astype(f32),
              params["g2"].astype(f32), params["be2"].astype(f32),
              params["w1"].T.astype(mdt), params["b1"].astype(f32),
              params["w2"].T.astype(mdt), params["b2"].astype(f32)]

    kernel = make_encoder_block_kernel()

    xq_spec = pl.BlockSpec((1, tq, E), lambda b, t: (b, t, 0))
    qh_spec = pl.BlockSpec((1, H, tq, hd), lambda b, t: (b, 0, t, 0))
    kv_idx = lambda b, t: (b, 0, 0, 0)   # constant across t -> fetched once per batch
    if KV_PIPELINE_MODE is None:
        kv_spec = pl.BlockSpec((1, H, S, hd), kv_idx)
    else:
        kv_spec = pl.BlockSpec((1, H, S, hd), kv_idx, pipeline_mode=KV_PIPELINE_MODE)

    in_specs = ([xq_spec, qh_spec, kv_spec, kv_spec]
                + [_const_spec(c, weight_mode) for c in consts])

    # Generation-aware VMEM budget from the real footprint.
    weight_bytes = sum(int(c.size) * c.dtype.itemsize for c in consts)
    act_bytes = 4 * (2 * tq * E + 3 * H * S * hd + 2 * H * tq * S
                     + H * tq * E + tq * ff_dim + 2 * tq * E)
    vmem_limit = _vmem_limit_bytes(2 * weight_bytes + act_bytes)

    flops = 2 * B * H * S * (2 * S * hd + hd * E) + 4 * B * S * E * ff_dim
    bytes_accessed = (query.size * query.dtype.itemsize
                      + int(q_heads.size + k_heads.size + v_heads.size)
                      * q_heads.dtype.itemsize
                      + weight_bytes
                      + B * S * E * query.dtype.itemsize)
    cost = pl.CostEstimate(flops=int(flops),
                           transcendentals=int(B * H * S * S),
                           bytes_accessed=int(bytes_accessed))

    return pl.pallas_call(
        kernel,
        out_shape=jax.ShapeDtypeStruct((B, S, E), query.dtype),
        grid=(B, S // tq),
        in_specs=in_specs,
        out_specs=pl.BlockSpec((1, tq, E), lambda b, t: (b, t, 0)),
        compiler_params=pltpu.CompilerParams(
            dimension_semantics=("parallel", "parallel"),
            vmem_limit_bytes=vmem_limit),
        cost_estimate=cost,
    )(query, q_heads, k_heads, v_heads, *consts)


def transformer_encoder_block(query, key, value, params, num_heads):
    try:
        # Single-buffer constant-index weight blocks (halves their VMEM; on v7x
        # this is the difference between fitting in 64 MiB and not compiling).
        return _encoder_block_impl(query, key, value, params, num_heads,
                                   pl.Buffered(1))
    except Exception:
        # Fallback for jax versions that reject pipeline_mode on top-level
        # pallas_call BlockSpecs: default double-buffering.
        return _encoder_block_impl(query, key, value, params, num_heads, None)


def init_params(key, embed_dim, ff_dim):
    ks = jax.random.split(key, 6)
    scale = 0.05
    return {
        "w_in": scale * jax.random.normal(ks[0], (3 * embed_dim, embed_dim), jnp.float32),
        "b_in": scale * jax.random.normal(ks[1], (1, 3 * embed_dim), jnp.float32),
        "w_out": scale * jax.random.normal(ks[2], (embed_dim, embed_dim), jnp.float32),
        "b_out": scale * jax.random.normal(ks[3], (1, embed_dim), jnp.float32),
        "g1": jnp.ones((1, embed_dim), jnp.float32),
        "be1": jnp.zeros((1, embed_dim), jnp.float32),
        "g2": jnp.ones((1, embed_dim), jnp.float32),
        "be2": jnp.zeros((1, embed_dim), jnp.float32),
        "w1": scale * jax.random.normal(ks[4], (ff_dim, embed_dim), jnp.float32),
        "b1": jnp.zeros((1, ff_dim), jnp.float32),
        "w2": scale * jax.random.normal(ks[5], (embed_dim, ff_dim), jnp.float32),
        "b2": jnp.zeros((1, embed_dim), jnp.float32),
    }


def reference(q, k, v, p, num_heads):
    """Pure-JAX f32 reference matching PyTorch nn.MultiheadAttention + block (eval)."""
    B, S, E = q.shape
    hd = E // num_heads
    w_in, b_in = p["w_in"], p["b_in"][0]
    qp = q @ w_in[:E].T + b_in[:E]
    kp = k @ w_in[E:2 * E].T + b_in[E:2 * E]
    vp = v @ w_in[2 * E:].T + b_in[2 * E:]

    def split(x):
        return x.reshape(B, S, num_heads, hd).transpose(0, 2, 1, 3)

    qh, kh, vh = split(qp), split(kp), split(vp)
    s = jnp.einsum("bhqd,bhkd->bhqk", qh, kh) / jnp.sqrt(hd)
    a = jax.nn.softmax(s, axis=-1)
    ctx = jnp.einsum("bhqk,bhkd->bhqd", a, vh).transpose(0, 2, 1, 3).reshape(B, S, E)
    attn_out = ctx @ p["w_out"].T + p["b_out"][0]

    def ln(x, g, b):
        mu = x.mean(-1, keepdims=True)
        var = ((x - mu) ** 2).mean(-1, keepdims=True)
        return (x - mu) / jnp.sqrt(var + 1e-6) * g + b

    out1 = ln(q + attn_out, p["g1"][0], p["be1"][0])
    h1 = jnp.maximum(out1 @ p["w1"].T + p["b1"][0], 0.0)
    ffn = h1 @ p["w2"].T + p["b2"][0]
    return ln(out1 + ffn, p["g2"][0], p["be2"][0])


if __name__ == "__main__":
    B, S, E, H, FF = 2, 8, 32, 4, 64
    key = jax.random.PRNGKey(0)
    kq, kk, kv, kp = jax.random.split(key, 4)
    query = jax.random.normal(kq, (B, S, E), jnp.float32)
    key_in = jax.random.normal(kk, (B, S, E), jnp.float32)
    value = jax.random.normal(kv, (B, S, E), jnp.float32)
    params = init_params(kp, E, FF)

    # Cross-attention style call (distinct q/k/v, as in the module signature).
    out = transformer_encoder_block(query, key_in, value, params, num_heads=H)
    out = jax.block_until_ready(out)
    ref = reference(query, key_in, value, params, num_heads=H)
    # Tolerance covers bf16 MXU operands (f32 accumulation) + approx reciprocal.
    np.testing.assert_allclose(np.asarray(out), np.asarray(ref), rtol=3e-2, atol=3e-2)

    # Self-attention path (exercises the fused (E, 3E) QKV projection).
    out_sa = transformer_encoder_block(query, query, query, params, num_heads=H)
    out_sa = jax.block_until_ready(out_sa)
    ref_sa = reference(query, query, query, params, num_heads=H)
    np.testing.assert_allclose(np.asarray(out_sa), np.asarray(ref_sa), rtol=3e-2, atol=3e-2)

    print("KERNEL_OK")
</pallas_src>

<mosaic_0001>
module attributes {stable_mosaic.version = 11 : i64} {
  func.func @_linear_kernel(%arg0: i32, %arg1: i32, %arg2: memref<1x8x32xf32, #tpu.memory_space<vmem>>, %arg3: memref<32x32xbf16, #tpu.memory_space<vmem>>, %arg4: memref<1x32xf32, #tpu.memory_space<vmem>>, %arg5: memref<1x8x32xbf16, #tpu.memory_space<vmem>>) attributes {dimension_semantics = [#tpu.dimension_semantics<parallel>, #tpu.dimension_semantics<parallel>], iteration_bounds = array<i64: 2, 1>, scalar_prefetch = 0 : i64, scratch_operands = 0 : i64, tpu.core_type = #tpu.core_type<tc>, window_params = [{transform_indices = @transform_0, window_bounds = array<i64: 1, 8, 32>}, {pipeline_mode = #tpu.pipeline_mode<synchronous>, transform_indices = @transform_1, window_bounds = array<i64: 32, 32>}, {pipeline_mode = #tpu.pipeline_mode<synchronous>, transform_indices = @transform_2, window_bounds = array<i64: 1, 32>}, {transform_indices = @transform_3, window_bounds = array<i64: 1, 8, 32>}]} {
    %c0 = arith.constant 0 : index
    %c0_0 = arith.constant 0 : index
    %c0_1 = arith.constant 0 : index
    %0 = vector.load %arg2[%c0, %c0_0, %c0_1] : memref<1x8x32xf32, #tpu.memory_space<vmem>>, vector<1x8x32xf32>
    %1 = vector.shape_cast %0 : vector<1x8x32xf32> to vector<8x32xf32>
    %2 = arith.truncf %1 : vector<8x32xf32> to vector<8x32xbf16>
    %c0_2 = arith.constant 0 : index
    %c0_3 = arith.constant 0 : index
    %3 = vector.load %arg3[%c0_2, %c0_3] : memref<32x32xbf16, #tpu.memory_space<vmem>>, vector<32x32xbf16>
    %cst = arith.constant dense<0.000000e+00> : vector<8x32xf32>
    %4 = tpu.matmul %2, %3, %cst {dimension_numbers = #tpu.dot_dimension_numbers<[1], [0], [0], [1], [0, 0, 1, 1], [], []>} : vector<8x32xbf16>, vector<32x32xbf16>, vector<8x32xf32> -> vector<8x32xf32>
    %c0_4 = arith.constant 0 : index
    %c0_5 = arith.constant 0 : index
    %5 = vector.load %arg4[%c0_4, %c0_5] : memref<1x32xf32, #tpu.memory_space<vmem>>, vector<1x32xf32>
    %6 = vector.broadcast %5 : vector<1x32xf32> to vector<8x32xf32>
    %7 = arith.addf %4, %6 : vector<8x32xf32>
    %8 = arith.truncf %7 : vector<8x32xf32> to vector<8x32xbf16>
    %c0_6 = arith.constant 0 : index
    %c0_7 = arith.constant 0 : index
    %c0_8 = arith.constant 0 : index
    %9 = vector.load %arg5[%c0_6, %c0_7, %c0_8] : memref<1x8x32xbf16, #tpu.memory_space<vmem>>, vector<1x8x32xbf16>
    %10 = vector.shape_cast %9 : vector<1x8x32xbf16> to vector<8x32xbf16>
    %11 = vector.shape_cast %8 : vector<8x32xbf16> to vector<1x8x32xbf16>
    tpu.vector_store %arg5[%c0_6, %c0_7, %c0_8], %11 {strides = array<i32>} : memref<1x8x32xbf16, #tpu.memory_space<vmem>>, vector<1x8x32xbf16>,
    return
  }
  func.func @transform_0(%arg0: i32, %arg1: i32) -> (i32, i32, i32) {
    %c0_i32 = arith.constant 0 : i32
    %c0_i32_0 = arith.constant 0 : i32
    return %arg0, %arg1, %c0_i32 : i32, i32, i32
  }
  func.func @transform_1(%arg0: i32, %arg1: i32) -> (i32, i32) {
    %c0_i32 = arith.constant 0 : i32
    %c0_i32_0 = arith.constant 0 : i32
    %c0_i32_1 = arith.constant 0 : i32
    return %c0_i32, %c0_i32_0 : i32, i32
  }
  func.func @transform_2(%arg0: i32, %arg1: i32) -> (i32, i32) {
    %c0_i32 = arith.constant 0 : i32
    %c0_i32_0 = arith.constant 0 : i32
    %c0_i32_1 = arith.constant 0 : i32
    return %c0_i32, %c0_i32_0 : i32, i32
  }
  func.func @transform_3(%arg0: i32, %arg1: i32) -> (i32, i32, i32) {
    %c0_i32 = arith.constant 0 : i32
    %c0_i32_0 = arith.constant 0 : i32
    return %arg0, %arg1, %c0_i32 : i32, i32, i32
  }
}

module attributes {stable_mosaic.version = 11 : i64} {
  func.func @_linear_kernel(%arg0: i32, %arg1: i32, %arg2: memref<1x8x32xf32, #tpu.memory_space<vmem>>, %arg3: memref<32x32xbf16, #tpu.memory_space<vmem>>, %arg4: memref<1x32xf32, #tpu.memory_space<vmem>>, %arg5: memref<1x8x32xbf16, #tpu.memory_space<vmem>>) attributes {dimension_semantics = [#tpu.dimension_semantics<parallel>, #tpu.dimension_semantics<parallel>], iteration_bounds = array<i64: 2, 1>, scalar_prefetch = 0 : i64, scratch_operands = 0 : i64, tpu.core_type = #tpu.core_type<tc>, window_params = [{transform_indices = @transform_0, window_bounds = array<i64: 1, 8, 32>}, {pipeline_mode = #tpu.pipeline_mode<synchronous>, transform_indices = @transform_1, window_bounds = array<i64: 32, 32>}, {pipeline_mode = #tpu.pipeline_mode<synchronous>, transform_indices = @transform_2, window_bounds = array<i64: 1, 32>}, {transform_indices = @transform_3, window_bounds = array<i64: 1, 8, 32>}]} {
    %c0 = arith.constant 0 : index
    %c0_0 = arith.constant 0 : index
    %c0_1 = arith.constant 0 : index
    %0 = vector.load %arg2[%c0, %c0_0, %c0_1] : memref<1x8x32xf32, #tpu.memory_space<vmem>>, vector<1x8x32xf32>
    %1 = vector.shape_cast %0 : vector<1x8x32xf32> to vector<8x32xf32>
    %2 = arith.truncf %1 : vector<8x32xf32> to vector<8x32xbf16>
    %c0_2 = arith.constant 0 : index
    %c0_3 = arith.constant 0 : index
    %3 = vector.load %arg3[%c0_2, %c0_3] : memref<32x32xbf16, #tpu.memory_space<vmem>>, vector<32x32xbf16>
    %cst = arith.constant dense<0.000000e+00> : vector<8x32xf32>
    %4 = tpu.matmul %2, %3, %cst {dimension_numbers = #tpu.dot_dimension_numbers<[1], [0], [0], [1], [0, 0, 1, 1], [], []>} : vector<8x32xbf16>, vector<32x32xbf16>, vector<8x32xf32> -> vector<8x32xf32>
    %c0_4 = arith.constant 0 : index
    %c0_5 = arith.constant 0 : index
    %5 = vector.load %arg4[%c0_4, %c0_5] : memref<1x32xf32, #tpu.memory_space<vmem>>, vector<1x32xf32>
    %6 = vector.broadcast %5 : vector<1x32xf32> to vector<8x32xf32>
    %7 = arith.addf %4, %6 : vector<8x32xf32>
    %8 = arith.truncf %7 : vector<8x32xf32> to vector<8x32xbf16>
    %c0_6 = arith.constant 0 : index
    %c0_7 = arith.constant 0 : index
    %c0_8 = arith.constant 0 : index
    %9 = vector.load %arg5[%c0_6, %c0_7, %c0_8] : memref<1x8x32xbf16, #tpu.memory_space<vmem>>, vector<1x8x32xbf16>
    %10 = vector.shape_cast %9 : vector<1x8x32xbf16> to vector<8x32xbf16>
    %11 = vector.shape_cast %8 : vector<8x32xbf16> to vector<1x8x32xbf16>
    tpu.vector_store %arg5[%c0_6, %c0_7, %c0_8], %11 {strides = array<i32>} : memref<1x8x32xbf16, #tpu.memory_space<vmem>>, vector<1x8x32xbf16>,
    return
  }
  func.func @transform_0(%arg0: i32, %arg1: i32) -> (i32, i32, i32) {
    %c0_i32 = arith.constant 0 : i32
    %c0_i32_0 = arith.constant 0 : i32
    return %arg0, %arg1, %c0_i32 : i32, i32, i32
  }
  func.func @transform_1(%arg0: i32, %arg1: i32) -> (i32, i32) {
    %c0_i32 = arith.constant 0 : i32
    %c0_i32_0 = arith.constant 0 : i32
    %c0_i32_1 = arith.constant 0 : i32
    return %c0_i32, %c0_i32_0 : i32, i32
  }
  func.func @transform_2(%arg0: i32, %arg1: i32) -> (i32, i32) {
    %c0_i32 = arith.constant 0 : i32
    %c0_i32_0 = arith.constant 0 : i32
    %c0_i32_1 = arith.constant 0 : i32
    return %c0_i32, %c0_i32_0 : i32, i32
  }
  func.func @transform_3(%arg0: i32, %arg1: i32) -> (i32, i32, i32) {
    %c0_i32 = arith.constant 0 : i32
    %c0_i32_0 = arith.constant 0 : i32
    return %arg0, %arg1, %c0_i32 : i32, i32, i32
  }
}

</mosaic_0001>

<llo_original>
// kernel: tpu_custom_call.1
$region0: #{tpu_custom_call.1}
  #allocation0 [shape = 'u32[]', space=smem, size = 0x4, offset = 0x4, fixed_abs, tag = 'smem constant byte address 0x4 - core index']
  #allocation1 [shape = 'u32[144,128]{1,0:T(1,128)}', space=vmem, size = 0x12000, scoped, tag = 'internal scratch']
  %s0 = inlined_call_operand.hbm [shape: f32[2,8,32], index: 0, kind: input, shape index: {}]
  %s1 = inlined_call_operand.hbm [shape: bf16[32,32], index: 1, kind: input, shape index: {}]
  %s2 = inlined_call_operand.vmem [shape: f32[1,32], index: 2, kind: input, shape index: {}]
  %s3 = inlined_call_operand.hbm [shape: bf16[2,8,32], index: 3, kind: output, shape index: {}]
  %s4 = sld [smem:[#allocation0]]
  $region53: #{tpu_custom_call.1} parent=0
    _
  %s6 = ssub.s32 1, %s4
  %s7 = scalar_select 0, %s6, %s4
  $region1: #{tpu_custom_call.1} parent=0
    #allocation2 [shape = 'u8[8192]{0}', space=vmem, size = 0x2000, scoped, tag = 'input window, operand 0']
    #allocation3 [shape = 's32[2]{0}', space=sflag, size = 0x8, scoped, tag = 'scoped memory for tpu_custom_call.1']
    #allocation4 [shape = 's32[2]{0}', space=sflag, size = 0x8, scoped, tag = 'scoped memory for tpu_custom_call.1']
    #allocation5 [shape = 'u8[8192]{0}', space=vmem, size = 0x2000, scoped, tag = 'input window, operand 1, single buffered']
    #allocation6 [shape = 's32[1]{0}', space=sflag, size = 0x4, scoped, tag = 'scoped memory for tpu_custom_call.1']
    #allocation7 [shape = 'u8[4096]{0}', space=vmem, size = 0x1000, scoped, tag = 'output window, operand 0']
    %8 = vsyncpa [#allocation3], 0
    %s9 = scalar_lea.sflag [#allocation3], 1
    %10 = vsyncpa %s9, 0
    %11 = vsyncpa [#allocation6], 0
    %12 = vsyncpa [#allocation4], 0
    %s13 = scalar_lea.sflag [#allocation4], 1
    %14 = vsyncpa %s13, 0
    loop: start=0, step=1, limit=4
    $region2: #{tpu_custom_call.1} parent=1 // loop_pre_header
      _
    $region3: #{tpu_custom_call.1} parent=1 // loop_header
      %s16 = sphi 0, %s20
      %p17 = scmp.ge.s32.totalorder %s16, 4
      %s23 = sphi 0, %s35
      %s24 = sphi 0, %s31
      %s25 = sphi 0, %s23
      %s26 = sphi 0, %s24
      %s27 = sphi 0, %s25
      %s28 = sphi 0, %s26
      %s40 = sphi 0, %s42
      %s43 = sphi 0, %s40
      %s44 = sphi 0, %s43
      %s60 = sphi 0, %s44
      %s64 = sphi 0, %s64
      %s66 = sphi 0, %s64
      %s67 = sphi 0, %s66
      %s81 = sphi 0, %s67
      %s85 = sphi 0, %s85
      %s87 = sphi 0, %s85
      %s88 = sphi 0, %s87
      %s102 = sphi 0, %s88
      %s110 = sphi 0, %s112
      %s113 = sphi 0, %s110
      %s114 = sphi 0, %s113
      %s130 = sphi 0, %s114
    $region4: #{tpu_custom_call.1} parent=1 // loop_header_branch
      %19 = sbr.rel (%p17) target = $region8
    $region5: #{tpu_custom_call.1} parent=1 // loop_body
      %s21 = ssub.s32 %s16, 1
      %s22 = ssub.s32 %s16, 2
      %s29 = sadd.s32 1, %s24
      %p30 = scmp.ge.s32.totalorder %s29, 1
      %s31 = scalar_select %p30, 0, %s29
      %s32 = sadd.s32 1, %s23
      %s33 = scalar_select %p30, %s32, %s23
      %p34 = scmp.ge.s32.totalorder %s33, 2
      %s35 = scalar_select %p34, 0, %s33
      %s36 = ssub.s32 %s23, %s35
      %s37 = ssub.s32 %s24, %s31
      %s38 = sor.u32 %s36, %s37
      %p39 = scmp.eq.s32.totalorder %s38, 0
      %s41 = sadd.s32 %s40, 1
      %s42 = scalar_select %p39, %s40, %s41
      %p45 = pneg %p39
      %p46 = scmp.eq.s32.totalorder %s16, 1
      %p47 = por %p45, %p46
      %p48 = scmp.ne.s32.totalorder %s40, %s43
      %p49 = scmp.eq.s32.totalorder %s16, 0
      %p50 = por %p48, %p49
      %p51 = scmp.ne.s32.totalorder %s40, %s43
      %p52 = scmp.eq.s32.totalorder %s21, 1
      %p53 = por %p51, %p52
      %p54 = scmp.ne.s32.totalorder %s43, %s44
      %p55 = scmp.eq.s32.totalorder %s21, 0
      %p56 = por %p54, %p55
      %p57 = scmp.ne.s32.totalorder %s43, %s44
      %p58 = scmp.eq.s32.totalorder %s22, 1
      %p59 = por %p57, %p58
      %p61 = scmp.ne.s32.totalorder %s44, %s60
      %p62 = scmp.eq.s32.totalorder %s22, 0
      %p63 = por %p61, %p62
      %s65 = sadd.s32 %s64, 1
      %p68 = scmp.eq.s32.totalorder %s16, 1
      %p69 = scmp.ne.s32.totalorder %s64, %s66
      %p70 = scmp.eq.s32.totalorder %s16, 0
      %p71 = por %p69, %p70
      %p72 = scmp.ne.s32.totalorder %s64, %s66
      %p73 = scmp.eq.s32.totalorder %s21, 1
      %p74 = por %p72, %p73
      %p75 = scmp.ne.s32.totalorder %s66, %s67
      %p76 = scmp.eq.s32.totalorder %s21, 0
      %p77 = por %p75, %p76
      %p78 = scmp.ne.s32.totalorder %s66, %s67
      %p79 = scmp.eq.s32.totalorder %s22, 1
      %p80 = por %p78, %p79
      %p82 = scmp.ne.s32.totalorder %s67, %s81
      %p83 = scmp.eq.s32.totalorder %s22, 0
      %p84 = por %p82, %p83
      %s86 = sadd.s32 %s85, 1
      %p89 = scmp.eq.s32.totalorder %s16, 1
      %p90 = scmp.ne.s32.totalorder %s85, %s87
      %p91 = scmp.eq.s32.totalorder %s16, 0
      %p92 = por %p90, %p91
      %p93 = scmp.ne.s32.totalorder %s85, %s87
      %p94 = scmp.eq.s32.totalorder %s21, 1
      %p95 = por %p93, %p94
      %p96 = scmp.ne.s32.totalorder %s87, %s88
      %p97 = scmp.eq.s32.totalorder %s21, 0
      %p98 = por %p96, %p97
      %p99 = scmp.ne.s32.totalorder %s87, %s88
      %p100 = scmp.eq.s32.totalorder %s22, 1
      %p101 = por %p99, %p100
      %p103 = scmp.ne.s32.totalorder %s88, %s102
      %p104 = scmp.eq.s32.totalorder %s22, 0
      %p105 = por %p103, %p104
      %s106 = ssub.s32 %s23, %s35
      %s107 = ssub.s32 %s24, %s31
      %s108 = sor.u32 %s106, %s107
      %p109 = scmp.eq.s32.totalorder %s108, 0
      %s111 = sadd.s32 %s110, 1
      %s112 = scalar_select %p109, %s110, %s111
      %p115 = pneg %p109
      %p116 = scmp.eq.s32.totalorder %s16, 1
      %p117 = por %p115, %p116
      %p118 = scmp.ne.s32.totalorder %s110, %s113
      %p119 = scmp.eq.s32.totalorder %s16, 0
      %p120 = por %p118, %p119
      %p121 = scmp.ne.s32.totalorder %s110, %s113
      %p122 = scmp.eq.s32.totalorder %s21, 1
      %p123 = por %p121, %p122
      %p124 = scmp.ne.s32.totalorder %s113, %s114
      %p125 = scmp.eq.s32.totalorder %s21, 0
      %p126 = por %p124, %p125
      %p127 = scmp.ne.s32.totalorder %s113, %s114
      %p128 = scmp.eq.s32.totalorder %s22, 1
      %p129 = por %p127, %p128
      %p131 = scmp.ne.s32.totalorder %s114, %s130
      %p132 = scmp.eq.s32.totalorder %s22, 0
      %p133 = por %p131, %p132
      %p134 = scmp.le.s32.totalorder 1, %s16
      %p135 = scmp.lt.s32.totalorder %s16, 3
      %p136 = pnand %p134, %p135
      %p137 = pneg %p136
      // Predicated region
      $region9: #{tpu_custom_call.1} parent=5 // pred_check
        _
      $region10: #{tpu_custom_call.1} parent=5 // pred_check_branch
        %139 = sbr.rel (%p136) target = $region12
      $region11: #{tpu_custom_call.1} parent=5 // pred_region
        %s140 = ssub.s32 %s16, 1
        // Predicated region
        $region13: #{tpu_custom_call.1} parent=11 // pred_check
          %p141 = pneg %p77
        $region14: #{tpu_custom_call.1} parent=11 // pred_check_branch
          %143 = sbr.rel (%p141) target = $region16
        $region15: #{tpu_custom_call.1} parent=11 // pred_region
          %s145 = ssub.s32 256, 256
          %146 = vsyncadd [#allocation6], %s145
          %s147 = sshll.u32 [#allocation5], 4
          %s148 = int_to_ptr.vmem [resolvable:$true] %s147
          %153 = dma.hbm_to_vmem [thread:$0]  %s1, 256, %s148, [#allocation6], 64, 64, 4
        $region16: #{tpu_custom_call.1} parent=11 // pred_fallthru
          _
        // Predicated region
        $region17: #{tpu_custom_call.1} parent=11 // pred_check
          %p154 = pneg %p98
        $region18: #{tpu_custom_call.1} parent=11 // pred_check_branch
          %156 = sbr.rel (%p154) target = $region20
        $region19: #{tpu_custom_call.1} parent=11 // pred_region
          _
        $region20: #{tpu_custom_call.1} parent=11 // pred_fallthru
          _
      $region12: #{tpu_custom_call.1} parent=5 // pred_fallthru
        _
      %p157 = scmp.lt.s32.totalorder %s16, 2
      // Predicated region
      $region21: #{tpu_custom_call.1} parent=5 // pred_check
        %p158 = pneg %p157
      $region22: #{tpu_custom_call.1} parent=5 // pred_check_branch
        %160 = sbr.rel (%p158) target = $region24
      $region23: #{tpu_custom_call.1} parent=5 // pred_region
        // Predicated region
        $region25: #{tpu_custom_call.1} parent=23 // pred_check
          %p161 = pneg %p50
        $region26: #{tpu_custom_call.1} parent=23 // pred_check_branch
          %163 = sbr.rel (%p161) target = $region28
        $region27: #{tpu_custom_call.1} parent=23 // pred_region
          %s164 = sand.u32 %s40, 1
          %s165 = scalar_lea.sflag [#allocation3], %s164
          %s166 = sand.u32 %s40, 1
          %s167 = smul.addr %s166, 8
          %s168 = scalar_lea.vmem [#allocation2], %s167
          %s170 = ssub.s32 128, 128
          %171 = vsyncadd %s165, %s170
          %s172 = sadd.s32 %s24, %s23
          %s173 = smul.addr %s172, 128
          %s174 = scalar_lea.hbm %s0, %s173
          %s176 = sshll.u32 %s168, 4
          %s177 = int_to_ptr.vmem [resolvable:$true] %s176
          %179 = dma.hbm_to_vmem [thread:$0]  %s174, 128, %s177, %s165
        $region28: #{tpu_custom_call.1} parent=23 // pred_fallthru
          _
      $region24: #{tpu_custom_call.1} parent=5 // pred_fallthru
        _
      %p180 = scmp.le.s32.totalorder 1, %s16
      %p181 = scmp.lt.s32.totalorder %s16, 3
      %p182 = pnand %p180, %p181
      %p183 = pneg %p182
      // Predicated region
      $region29: #{tpu_custom_call.1} parent=5 // pred_check
        _
      $region30: #{tpu_custom_call.1} parent=5 // pred_check_branch
        %185 = sbr.rel (%p182) target = $region32
      $region31: #{tpu_custom_call.1} parent=5 // pred_region
        %s186 = ssub.s32 %s16, 1
        %s187 = sand.u32 %s43, 1
        %s188 = scalar_lea.sflag [#allocation3], %s187
        %s189 = sand.u32 %s43, 1
        %s190 = smul.addr %s189, 8
        %s191 = scalar_lea.vmem [#allocation2], %s190
        // Predicated region
        $region33: #{tpu_custom_call.1} parent=31 // pred_check
          %p192 = pneg %p56
        $region34: #{tpu_custom_call.1} parent=31 // pred_check_branch
          %194 = sbr.rel (%p192) target = $region36
        $region35: #{tpu_custom_call.1} parent=31 // pred_region
          %195 = dma.done %s188, 128
        $region36: #{tpu_custom_call.1} parent=31 // pred_fallthru
          _
        // Predicated region
        $region37: #{tpu_custom_call.1} parent=31 // pred_check
          %p196 = pneg %p77
        $region38: #{tpu_custom_call.1} parent=31 // pred_check_branch
          %198 = sbr.rel (%p196) target = $region40
        $region39: #{tpu_custom_call.1} parent=31 // pred_region
          %199 = dma.done [#allocation6], 256
        $region40: #{tpu_custom_call.1} parent=31 // pred_fallthru
          _
        %s200 = sand.u32 %s43, 1
        %s201 = scalar_lea.sflag [#allocation3], %s200
        %s202 = sand.u32 %s43, 1
        %s203 = smul.addr %s202, 8
        %s204 = scalar_lea.vmem [#allocation2], %s203
        %p205 = pneg %p56
        %p206 = pneg %p53
        %p207 = pneg %p77
        %p208 = pneg %p74
        %p209 = pneg %p98
        %p210 = pneg %p95
        %p211 = pneg %p126
        %p212 = pneg %p123
        %s213 = sand.u32 %s113, 1
        %s214 = scalar_lea.sflag [#allocation4], %s213
        %s215 = sand.u32 %s113, 1
        %s216 = smul.addr %s215, 4
        %s217 = scalar_lea.vmem [#allocation7], %s216
        %v219 = vld [vmem:[%s191] sm:$0xff]
        %v220 = vpack.c.bf16 %v219, %v219
        %v221 = vld [vmem:[#allocation5] sm:$0xf]
        %v222 = vld [vmem:[#allocation5 + $0x4] sm:$0xf]
        %v223 = vld [vmem:[#allocation5 + $0x8] sm:$0xf]
        %v224 = vld [vmem:[#allocation5 + $0xc] sm:$0xf]
        %v225 = vld [vmem:[%s2] sm:$0x1]
        %v227 = vlaneseq
        %v228 = vshrl.u32 %v227, 7
        %v229 = vsub.s32 0, %v228
        %v230 = vrot.slane %v225, %v229
        %v236 = vunpack.c.l.b16 %v221
        %v237 = vunpack.c.l.b16 %v222
        %v238 = vunpack.c.l.b16 %v223
        %v239 = vunpack.c.l.b16 %v224
        %v240 = vpack.c.b16 %v237, %v236
        %v241 = vpack.c.b16 %v239, %v238
        %vm244 = vcmask 261120
        %v246 = vsel %vm244, %v220, 0
        %248 = vmatprep.subr.bf16.mxu0 0
        %249 = vmatpush1.bf16.msra.mxu0 0
        %250 = vmatprep.subr.bf16.mxu0 0
        %251 = vmatpush1.bf16.msra.mxu0 0
        %252 = vmatprep.subr.bf16.mxu0 0
        %253 = vmatpush1.bf16.msra.mxu0 0
        %254 = vmatprep.subr.bf16.mxu0 0
        %255 = vmatpush1.bf16.msra.mxu0 0
        %256 = vmatprep.subr.bf16.mxu0 0
        %257 = vmatpush1.bf16.msra.mxu0 0
        %258 = vmatprep.subr.bf16.mxu0 0
        %259 = vmatpush1.bf16.msra.mxu0 0
        %260 = vmatprep.subr.bf16.mxu0 0
        %261 = vmatpush1.bf16.msra.mxu0 %v241
        %262 = vmatprep.subr.bf16.mxu0 0
        %263 = vmatpush1.bf16.msra.mxu0 %v240
        %264 = vmatprep.subr.bf16.mxu0 0
        %265 = vmatpush2.bf16.msra.mxu0 0
        %266 = vmatprep.subr.bf16.mxu0 0
        %267 = vmatpush2.bf16.msra.mxu0 0
        %268 = vmatprep.subr.bf16.mxu0 0
        %269 = vmatpush2.bf16.msra.mxu0 0
        %270 = vmatprep.subr.bf16.mxu0 0
        %271 = vmatpush2.bf16.msra.mxu0 0
        %272 = vmatprep.subr.bf16.mxu0 0
        %273 = vmatpush2.bf16.msra.mxu0 0
        %274 = vmatprep.subr.bf16.mxu0 0
        %275 = vmatpush2.bf16.msra.mxu0 0
        %276 = vmatprep.subr.bf16.mxu0 0
        %277 = vmatpush2.bf16.msra.mxu0 0
        %278 = vmatprep.subr.bf16.mxu0 0
        %279 = vmatpush2.bf16.msra.mxu0 0
        %280 = vmatprep.mubr.bf16.mxu0 0
        %281 = vmatmul.mubr.bf16.gmra.mxu0 %v246
        %v282 = vpop.f32.mrf.mxu0
        %v283 = vadd.f32 %v230, %v282
        %v284 = vpop.f32.mrf.mxu0
        %v285 = vpop.f32.mrf.mxu0
        %v286 = vpop.f32.mrf.mxu0
        %287 = vdwg.mxu0
        %v288 = vpack.c.bf16 %v283, %v283
        %vm289 = vcmask 257024
        %290 = vst.msk [vmem:[%s217] sm:$0xf] %vm289, %v288
        %s291 = sand.u32 %s113, 1
        %s292 = scalar_lea.sflag [#allocation4], %s291
        %s293 = sand.u32 %s113, 1
        %s294 = smul.addr %s293, 4
        %s295 = scalar_lea.vmem [#allocation7], %s294
        // Predicated region
        $region41: #{tpu_custom_call.1} parent=31 // pred_check
          %p296 = pneg %p123
        $region42: #{tpu_custom_call.1} parent=31 // pred_check_branch
          %298 = sbr.rel (%p296) target = $region44
        $region43: #{tpu_custom_call.1} parent=31 // pred_region
          %s300 = ssub.s32 64, 64
          %301 = vsyncadd %s292, %s300
          %s302 = sadd.s32 %s26, %s25
          %s303 = smul.addr %s302, 64
          %s304 = scalar_lea.hbm %s3, %s303
          %s306 = sshll.u32 %s295, 4
          %s307 = int_to_ptr.vmem [resolvable:$true] %s306
          %309 = dma.vmem_to_hbm [thread:$0]  %s307, 64, %s304, %s292
        $region44: #{tpu_custom_call.1} parent=31 // pred_fallthru
          _
      $region32: #{tpu_custom_call.1} parent=5 // pred_fallthru
        _
      %p310 = scmp.le.s32.totalorder 2, %s16
      // Predicated region
      $region45: #{tpu_custom_call.1} parent=5 // pred_check
        %p311 = pneg %p310
      $region46: #{tpu_custom_call.1} parent=5 // pred_check_branch
        %313 = sbr.rel (%p311) target = $region48
      $region47: #{tpu_custom_call.1} parent=5 // pred_region
        %s314 = ssub.s32 %s16, 2
        // Predicated region
        $region49: #{tpu_custom_call.1} parent=47 // pred_check
          %p315 = pneg %p129
        $region50: #{tpu_custom_call.1} parent=47 // pred_check_branch
          %317 = sbr.rel (%p315) target = $region52
        $region51: #{tpu_custom_call.1} parent=47 // pred_region
          %s318 = sand.u32 %s114, 1
          %s319 = scalar_lea.sflag [#allocation4], %s318
          %s320 = sand.u32 %s114, 1
          %s321 = smul.addr %s320, 4
          %s322 = scalar_lea.vmem [#allocation7], %s321
          %323 = dma.done %s319, 64
        $region52: #{tpu_custom_call.1} parent=47 // pred_fallthru
          _
      $region48: #{tpu_custom_call.1} parent=5 // pred_fallthru
        _
    $region6: #{tpu_custom_call.1} parent=1 // loop_footer
      %s20 = sadd.s32 1, %s16
    $region7: #{tpu_custom_call.1} parent=1 // loop_footer_branch
      %15 = sbr.rel target = $region3
    $region8: #{tpu_custom_call.1} parent=1 // loop_exit
      _
    %324 = vsyncpa [#allocation3], 1
    %s325 = scalar_lea.sflag [#allocation3], 1
    %326 = vsyncpa %s325, 1
    %327 = vsyncpa [#allocation6], 1
    %328 = vsyncpa [#allocation4], 1
    %s329 = scalar_lea.sflag [#allocation4], 1
    %330 = vsyncpa %s329, 1

// kernel: tpu_custom_call.1
$region0: #{tpu_custom_call.1}
  #allocation0 [shape = 'u32[]', space=smem, size = 0x4, offset = 0x4, fixed_abs, tag = 'smem constant byte address 0x4 - core index']
  #allocation1 [shape = 'u32[144,128]{1,0:T(1,128)}', space=vmem, size = 0x12000, scoped, tag = 'internal scratch']
  %s0 = inlined_call_operand.hbm [shape: f32[2,8,32], index: 0, kind: input, shape index: {}]
  %s1 = inlined_call_operand.hbm [shape: bf16[32,32], index: 1, kind: input, shape index: {}]
  %s2 = inlined_call_operand.vmem [shape: f32[1,32], index: 2, kind: input, shape index: {}]
  %s3 = inlined_call_operand.hbm [shape: bf16[2,8,32], index: 3, kind: output, shape index: {}]
  %s4 = sld [smem:[#allocation0]]
  $region53: #{tpu_custom_call.1} parent=0
    _
  %s6 = ssub.s32 1, %s4
  %s7 = scalar_select 0, %s6, %s4
  $region1: #{tpu_custom_call.1} parent=0
    #allocation2 [shape = 'u8[8192]{0}', space=vmem, size = 0x2000, scoped, tag = 'input window, operand 0']
    #allocation3 [shape = 's32[2]{0}', space=sflag, size = 0x8, scoped, tag = 'scoped memory for tpu_custom_call.1']
    #allocation4 [shape = 's32[2]{0}', space=sflag, size = 0x8, scoped, tag = 'scoped memory for tpu_custom_call.1']
    #allocation5 [shape = 'u8[8192]{0}', space=vmem, size = 0x2000, scoped, tag = 'input window, operand 1, single buffered']
    #allocation6 [shape = 's32[1]{0}', space=sflag, size = 0x4, scoped, tag = 'scoped memory for tpu_custom_call.1']
    #allocation7 [shape = 'u8[4096]{0}', space=vmem, size = 0x1000, scoped, tag = 'output window, operand 0']
    %8 = vsyncpa [#allocation3], 0
    %s9 = scalar_lea.sflag [#allocation3], 1
    %10 = vsyncpa %s9, 0
    %11 = vsyncpa [#allocation6], 0
    %12 = vsyncpa [#allocation4], 0
    %s13 = scalar_lea.sflag [#allocation4], 1
    %14 = vsyncpa %s13, 0
    loop: start=0, step=1, limit=4
    $region2: #{tpu_custom_call.1} parent=1 // loop_pre_header
      _
    $region3: #{tpu_custom_call.1} parent=1 // loop_header
      %s16 = sphi 0, %s20
      %p17 = scmp.ge.s32.totalorder %s16, 4
      %s23 = sphi 0, %s35
      %s24 = sphi 0, %s31
      %s25 = sphi 0, %s23
      %s26 = sphi 0, %s24
      %s27 = sphi 0, %s25
      %s28 = sphi 0, %s26
      %s40 = sphi 0, %s42
      %s43 = sphi 0, %s40
      %s44 = sphi 0, %s43
      %s60 = sphi 0, %s44
      %s64 = sphi 0, %s64
      %s66 = sphi 0, %s64
      %s67 = sphi 0, %s66
      %s81 = sphi 0, %s67
      %s85 = sphi 0, %s85
      %s87 = sphi 0, %s85
      %s88 = sphi 0, %s87
      %s102 = sphi 0, %s88
      %s110 = sphi 0, %s112
      %s113 = sphi 0, %s110
      %s114 = sphi 0, %s113
      %s130 = sphi 0, %s114
    $region4: #{tpu_custom_call.1} parent=1 // loop_header_branch
      %19 = sbr.rel (%p17) target = $region8
    $region5: #{tpu_custom_call.1} parent=1 // loop_body
      %s21 = ssub.s32 %s16, 1
      %s22 = ssub.s32 %s16, 2
      %s29 = sadd.s32 1, %s24
      %p30 = scmp.ge.s32.totalorder %s29, 1
      %s31 = scalar_select %p30, 0, %s29
      %s32 = sadd.s32 1, %s23
      %s33 = scalar_select %p30, %s32, %s23
      %p34 = scmp.ge.s32.totalorder %s33, 2
      %s35 = scalar_select %p34, 0, %s33
      %s36 = ssub.s32 %s23, %s35
      %s37 = ssub.s32 %s24, %s31
      %s38 = sor.u32 %s36, %s37
      %p39 = scmp.eq.s32.totalorder %s38, 0
      %s41 = sadd.s32 %s40, 1
      %s42 = scalar_select %p39, %s40, %s41
      %p45 = pneg %p39
      %p46 = scmp.eq.s32.totalorder %s16, 1
      %p47 = por %p45, %p46
      %p48 = scmp.ne.s32.totalorder %s40, %s43
      %p49 = scmp.eq.s32.totalorder %s16, 0
      %p50 = por %p48, %p49
      %p51 = scmp.ne.s32.totalorder %s40, %s43
      %p52 = scmp.eq.s32.totalorder %s21, 1
      %p53 = por %p51, %p52
      %p54 = scmp.ne.s32.totalorder %s43, %s44
      %p55 = scmp.eq.s32.totalorder %s21, 0
      %p56 = por %p54, %p55
      %p57 = scmp.ne.s32.totalorder %s43, %s44
      %p58 = scmp.eq.s32.totalorder %s22, 1
      %p59 = por %p57, %p58
      %p61 = scmp.ne.s32.totalorder %s44, %s60
      %p62 = scmp.eq.s32.totalorder %s22, 0
      %p63 = por %p61, %p62
      %s65 = sadd.s32 %s64, 1
      %p68 = scmp.eq.s32.totalorder %s16, 1
      %p69 = scmp.ne.s32.totalorder %s64, %s66
      %p70 = scmp.eq.s32.totalorder %s16, 0
      %p71 = por %p69, %p70
      %p72 = scmp.ne.s32.totalorder %s64, %s66
      %p73 = scmp.eq.s32.totalorder %s21, 1
      %p74 = por %p72, %p73
      %p75 = scmp.ne.s32.totalorder %s66, %s67
      %p76 = scmp.eq.s32.totalorder %s21, 0
      %p77 = por %p75, %p76
      %p78 = scmp.ne.s32.totalorder %s66, %s67
      %p79 = scmp.eq.s32.totalorder %s22, 1
      %p80 = por %p78, %p79
      %p82 = scmp.ne.s32.totalorder %s67, %s81
      %p83 = scmp.eq.s32.totalorder %s22, 0
      %p84 = por %p82, %p83
      %s86 = sadd.s32 %s85, 1
      %p89 = scmp.eq.s32.totalorder %s16, 1
      %p90 = scmp.ne.s32.totalorder %s85, %s87
      %p91 = scmp.eq.s32.totalorder %s16, 0
      %p92 = por %p90, %p91
      %p93 = scmp.ne.s32.totalorder %s85, %s87
      %p94 = scmp.eq.s32.totalorder %s21, 1
      %p95 = por %p93, %p94
      %p96 = scmp.ne.s32.totalorder %s87, %s88
      %p97 = scmp.eq.s32.totalorder %s21, 0
      %p98 = por %p96, %p97
      %p99 = scmp.ne.s32.totalorder %s87, %s88
      %p100 = scmp.eq.s32.totalorder %s22, 1
      %p101 = por %p99, %p100
      %p103 = scmp.ne.s32.totalorder %s88, %s102
      %p104 = scmp.eq.s32.totalorder %s22, 0
      %p105 = por %p103, %p104
      %s106 = ssub.s32 %s23, %s35
      %s107 = ssub.s32 %s24, %s31
      %s108 = sor.u32 %s106, %s107
      %p109 = scmp.eq.s32.totalorder %s108, 0
      %s111 = sadd.s32 %s110, 1
      %s112 = scalar_select %p109, %s110, %s111
      %p115 = pneg %p109
      %p116 = scmp.eq.s32.totalorder %s16, 1
      %p117 = por %p115, %p116
      %p118 = scmp.ne.s32.totalorder %s110, %s113
      %p119 = scmp.eq.s32.totalorder %s16, 0
      %p120 = por %p118, %p119
      %p121 = scmp.ne.s32.totalorder %s110, %s113
      %p122 = scmp.eq.s32.totalorder %s21, 1
      %p123 = por %p121, %p122
      %p124 = scmp.ne.s32.totalorder %s113, %s114
      %p125 = scmp.eq.s32.totalorder %s21, 0
      %p126 = por %p124, %p125
      %p127 = scmp.ne.s32.totalorder %s113, %s114
      %p128 = scmp.eq.s32.totalorder %s22, 1
      %p129 = por %p127, %p128
      %p131 = scmp.ne.s32.totalorder %s114, %s130
      %p132 = scmp.eq.s32.totalorder %s22, 0
      %p133 = por %p131, %p132
      %p134 = scmp.le.s32.totalorder 1, %s16
      %p135 = scmp.lt.s32.totalorder %s16, 3
      %p136 = pnand %p134, %p135
      %p137 = pneg %p136
      // Predicated region
      $region9: #{tpu_custom_call.1} parent=5 // pred_check
        _
      $region10: #{tpu_custom_call.1} parent=5 // pred_check_branch
        %139 = sbr.rel (%p136) target = $region12
      $region11: #{tpu_custom_call.1} parent=5 // pred_region
        %s140 = ssub.s32 %s16, 1
        // Predicated region
        $region13: #{tpu_custom_call.1} parent=11 // pred_check
          %p141 = pneg %p77
        $region14: #{tpu_custom_call.1} parent=11 // pred_check_branch
          %143 = sbr.rel (%p141) target = $region16
        $region15: #{tpu_custom_call.1} parent=11 // pred_region
          %s145 = ssub.s32 256, 256
          %146 = vsyncadd [#allocation6], %s145
          %s147 = sshll.u32 [#allocation5], 4
          %s148 = int_to_ptr.vmem [resolvable:$true] %s147
          %153 = dma.hbm_to_vmem [thread:$0]  %s1, 256, %s148, [#allocation6], 64, 64, 4
        $region16: #{tpu_custom_call.1} parent=11 // pred_fallthru
          _
        // Predicated region
        $region17: #{tpu_custom_call.1} parent=11 // pred_check
          %p154 = pneg %p98
        $region18: #{tpu_custom_call.1} parent=11 // pred_check_branch
          %156 = sbr.rel (%p154) target = $region20
        $region19: #{tpu_custom_call.1} parent=11 // pred_region
          _
        $region20: #{tpu_custom_call.1} parent=11 // pred_fallthru
          _
      $region12: #{tpu_custom_call.1} parent=5 // pred_fallthru
        _
      %p157 = scmp.lt.s32.totalorder %s16, 2
      // Predicated region
      $region21: #{tpu_custom_call.1} parent=5 // pred_check
        %p158 = pneg %p157
      $region22: #{tpu_custom_call.1} parent=5 // pred_check_branch
        %160 = sbr.rel (%p158) target = $region24
      $region23: #{tpu_custom_call.1} parent=5 // pred_region
        // Predicated region
        $region25: #{tpu_custom_call.1} parent=23 // pred_check
          %p161 = pneg %p50
        $region26: #{tpu_custom_call.1} parent=23 // pred_check_branch
          %163 = sbr.rel (%p161) target = $region28
        $region27: #{tpu_custom_call.1} parent=23 // pred_region
          %s164 = sand.u32 %s40, 1
          %s165 = scalar_lea.sflag [#allocation3], %s164
          %s166 = sand.u32 %s40, 1
          %s167 = smul.addr %s166, 8
          %s168 = scalar_lea.vmem [#allocation2], %s167
          %s170 = ssub.s32 128, 128
          %171 = vsyncadd %s165, %s170
          %s172 = sadd.s32 %s24, %s23
          %s173 = smul.addr %s172, 128
          %s174 = scalar_lea.hbm %s0, %s173
          %s176 = sshll.u32 %s168, 4
          %s177 = int_to_ptr.vmem [resolvable:$true] %s176
          %179 = dma.hbm_to_vmem [thread:$0]  %s174, 128, %s177, %s165
        $region28: #{tpu_custom_call.1} parent=23 // pred_fallthru
          _
      $region24: #{tpu_custom_call.1} parent=5 // pred_fallthru
        _
      %p180 = scmp.le.s32.totalorder 1, %s16
      %p181 = scmp.lt.s32.totalorder %s16, 3
      %p182 = pnand %p180, %p181
      %p183 = pneg %p182
      // Predicated region
      $region29: #{tpu_custom_call.1} parent=5 // pred_check
        _
      $region30: #{tpu_custom_call.1} parent=5 // pred_check_branch
        %185 = sbr.rel (%p182) target = $region32
      $region31: #{tpu_custom_call.1} parent=5 // pred_region
        %s186 = ssub.s32 %s16, 1
        %s187 = sand.u32 %s43, 1
        %s188 = scalar_lea.sflag [#allocation3], %s187
        %s189 = sand.u32 %s43, 1
        %s190 = smul.addr %s189, 8
        %s191 = scalar_lea.vmem [#allocation2], %s190
        // Predicated region
        $region33: #{tpu_custom_call.1} parent=31 // pred_check
          %p192 = pneg %p56
        $region34: #{tpu_custom_call.1} parent=31 // pred_check_branch
          %194 = sbr.rel (%p192) target = $region36
        $region35: #{tpu_custom_call.1} parent=31 // pred_region
          %195 = dma.done %s188, 128
        $region36: #{tpu_custom_call.1} parent=31 // pred_fallthru
          _
        // Predicated region
        $region37: #{tpu_custom_call.1} parent=31 // pred_check
          %p196 = pneg %p77
        $region38: #{tpu_custom_call.1} parent=31 // pred_check_branch
          %198 = sbr.rel (%p196) target = $region40
        $region39: #{tpu_custom_call.1} parent=31 // pred_region
          %199 = dma.done [#allocation6], 256
        $region40: #{tpu_custom_call.1} parent=31 // pred_fallthru
          _
        %s200 = sand.u32 %s43, 1
        %s201 = scalar_lea.sflag [#allocation3], %s200
        %s202 = sand.u32 %s43, 1
        %s203 = smul.addr %s202, 8
        %s204 = scalar_lea.vmem [#allocation2], %s203
        %p205 = pneg %p56
        %p206 = pneg %p53
        %p207 = pneg %p77
        %p208 = pneg %p74
        %p209 = pneg %p98
        %p210 = pneg %p95
        %p211 = pneg %p126
        %p212 = pneg %p123
        %s213 = sand.u32 %s113, 1
        %s214 = scalar_lea.sflag [#allocation4], %s213
        %s215 = sand.u32 %s113, 1
        %s216 = smul.addr %s215, 4
        %s217 = scalar_lea.vmem [#allocation7], %s216
        %v219 = vld [vmem:[%s191] sm:$0xff]
        %v220 = vpack.c.bf16 %v219, %v219
        %v221 = vld [vmem:[#allocation5] sm:$0xf]
        %v222 = vld [vmem:[#allocation5 + $0x4] sm:$0xf]
        %v223 = vld [vmem:[#allocation5 + $0x8] sm:$0xf]
        %v224 = vld [vmem:[#allocation5 + $0xc] sm:$0xf]
        %v225 = vld [vmem:[%s2] sm:$0x1]
        %v227 = vlaneseq
        %v228 = vshrl.u32 %v227, 7
        %v229 = vsub.s32 0, %v228
        %v230 = vrot.slane %v225, %v229
        %v236 = vunpack.c.l.b16 %v221
        %v237 = vunpack.c.l.b16 %v222
        %v238 = vunpack.c.l.b16 %v223
        %v239 = vunpack.c.l.b16 %v224
        %v240 = vpack.c.b16 %v237, %v236
        %v241 = vpack.c.b16 %v239, %v238
        %vm244 = vcmask 261120
        %v246 = vsel %vm244, %v220, 0
        %248 = vmatprep.subr.bf16.mxu0 0
        %249 = vmatpush1.bf16.msra.mxu0 0
        %250 = vmatprep.subr.bf16.mxu0 0
        %251 = vmatpush1.bf16.msra.mxu0 0
        %252 = vmatprep.subr.bf16.mxu0 0
        %253 = vmatpush1.bf16.msra.mxu0 0
        %254 = vmatprep.subr.bf16.mxu0 0
        %255 = vmatpush1.bf16.msra.mxu0 0
        %256 = vmatprep.subr.bf16.mxu0 0
        %257 = vmatpush1.bf16.msra.mxu0 0
        %258 = vmatprep.subr.bf16.mxu0 0
        %259 = vmatpush1.bf16.msra.mxu0 0
        %260 = vmatprep.subr.bf16.mxu0 0
        %261 = vmatpush1.bf16.msra.mxu0 %v241
        %262 = vmatprep.subr.bf16.mxu0 0
        %263 = vmatpush1.bf16.msra.mxu0 %v240
        %264 = vmatprep.subr.bf16.mxu0 0
        %265 = vmatpush2.bf16.msra.mxu0 0
        %266 = vmatprep.subr.bf16.mxu0 0
        %267 = vmatpush2.bf16.msra.mxu0 0
        %268 = vmatprep.subr.bf16.mxu0 0
        %269 = vmatpush2.bf16.msra.mxu0 0
        %270 = vmatprep.subr.bf16.mxu0 0
        %271 = vmatpush2.bf16.msra.mxu0 0
        %272 = vmatprep.subr.bf16.mxu0 0
        %273 = vmatpush2.bf16.msra.mxu0 0
        %274 = vmatprep.subr.bf16.mxu0 0
        %275 = vmatpush2.bf16.msra.mxu0 0
        %276 = vmatprep.subr.bf16.mxu0 0
        %277 = vmatpush2.bf16.msra.mxu0 0
        %278 = vmatprep.subr.bf16.mxu0 0
        %279 = vmatpush2.bf16.msra.mxu0 0
        %280 = vmatprep.mubr.bf16.mxu0 0
        %281 = vmatmul.mubr.bf16.gmra.mxu0 %v246
        %v282 = vpop.f32.mrf.mxu0
        %v283 = vadd.f32 %v230, %v282
        %v284 = vpop.f32.mrf.mxu0
        %v285 = vpop.f32.mrf.mxu0
        %v286 = vpop.f32.mrf.mxu0
        %287 = vdwg.mxu0
        %v288 = vpack.c.bf16 %v283, %v283
        %vm289 = vcmask 257024
        %290 = vst.msk [vmem:[%s217] sm:$0xf] %vm289, %v288
        %s291 = sand.u32 %s113, 1
        %s292 = scalar_lea.sflag [#allocation4], %s291
        %s293 = sand.u32 %s113, 1
        %s294 = smul.addr %s293, 4
        %s295 = scalar_lea.vmem [#allocation7], %s294
        // Predicated region
        $region41: #{tpu_custom_call.1} parent=31 // pred_check
          %p296 = pneg %p123
        $region42: #{tpu_custom_call.1} parent=31 // pred_check_branch
          %298 = sbr.rel (%p296) target = $region44
        $region43: #{tpu_custom_call.1} parent=31 // pred_region
          %s300 = ssub.s32 64, 64
          %301 = vsyncadd %s292, %s300
          %s302 = sadd.s32 %s26, %s25
          %s303 = smul.addr %s302, 64
          %s304 = scalar_lea.hbm %s3, %s303
          %s306 = sshll.u32 %s295, 4
          %s307 = int_to_ptr.vmem [resolvable:$true] %s306
          %309 = dma.vmem_to_hbm [thread:$0]  %s307, 64, %s304, %s292
        $region44: #{tpu_custom_call.1} parent=31 // pred_fallthru
          _
      $region32: #{tpu_custom_call.1} parent=5 // pred_fallthru
        _
      %p310 = scmp.le.s32.totalorder 2, %s16
      // Predicated region
      $region45: #{tpu_custom_call.1} parent=5 // pred_check
        %p311 = pneg %p310
      $region46: #{tpu_custom_call.1} parent=5 // pred_check_branch
        %313 = sbr.rel (%p311) target = $region48
      $region47: #{tpu_custom_call.1} parent=5 // pred_region
        %s314 = ssub.s32 %s16, 2
        // Predicated region
        $region49: #{tpu_custom_call.1} parent=47 // pred_check
          %p315 = pneg %p129
        $region50: #{tpu_custom_call.1} parent=47 // pred_check_branch
          %317 = sbr.rel (%p315) target = $region52
        $region51: #{tpu_custom_call.1} parent=47 // pred_region
          %s318 = sand.u32 %s114, 1
          %s319 = scalar_lea.sflag [#allocation4], %s318
          %s320 = sand.u32 %s114, 1
          %s321 = smul.addr %s320, 4
          %s322 = scalar_lea.vmem [#allocation7], %s321
          %323 = dma.done %s319, 64
        $region52: #{tpu_custom_call.1} parent=47 // pred_fallthru
          _
      $region48: #{tpu_custom_call.1} parent=5 // pred_fallthru
        _
    $region6: #{tpu_custom_call.1} parent=1 // loop_footer
      %s20 = sadd.s32 1, %s16
    $region7: #{tpu_custom_call.1} parent=1 // loop_footer_branch
      %15 = sbr.rel target = $region3
    $region8: #{tpu_custom_call.1} parent=1 // loop_exit
      _
    %324 = vsyncpa [#allocation3], 1
    %s325 = scalar_lea.sflag [#allocation3], 1
    %326 = vsyncpa %s325, 1
    %327 = vsyncpa [#allocation6], 1
    %328 = vsyncpa [#allocation4], 1
    %s329 = scalar_lea.sflag [#allocation4], 1
    %330 = vsyncpa %s329, 1

</llo_original>
